<compile_context>
chip_gen: v7x
topology: tpu7x:2x2x1
jax: 0.10.0
libtpu: 0.0.40
codegen_flags: <defaults>
</compile_context>

<pallas_src>
import functools

import jax
import jax.numpy as jnp
from jax import lax
from jax.experimental import pallas as pl
from jax.experimental.pallas import tpu as pltpu

LN_EPS = 1e-5  # torch.nn.LayerNorm default


def _layernorm_rows(x_f32, gamma_f32, beta_f32):
    # Biased variance over the last axis (torch.nn.LayerNorm semantics), f32 math.
    mu = jnp.mean(x_f32, axis=-1, keepdims=True)
    xc = x_f32 - mu
    var = jnp.mean(xc * xc, axis=-1, keepdims=True)
    return xc * lax.rsqrt(var + LN_EPS) * gamma_f32 + beta_f32


# ----------------------------- VMEM budgeting helpers -----------------------------
def _vmem_capacity_bytes():
    # Generation-aware physical VMEM (128 MiB on v5e/v6e, 64 MiB/TC on v7x).
    try:
        info = pltpu.get_tpu_info()
        cap = getattr(info, "vmem_capacity_bytes", None)
        if cap:
            return int(cap)
    except Exception:
        pass
    return 64 * 1024 * 1024  # conservative fallback (v7x per-TC size)


def _vmem_budget_bytes():
    # Leave ~20% headroom for compiler internal scratch / semaphores / slack.
    return int(0.8 * _vmem_capacity_bytes())


def _estimate_vmem(tm, dim, th, x_dtype, w_dtype):
    isz = jnp.dtype(x_dtype).itemsize
    wsz = jnp.dtype(w_dtype).itemsize
    resident = 3 * dim * wsz + 2 * dim * isz              # gamma/beta/b2 (single-buffered)
    w_chunks = 2 * (dim * th + th + th * dim) * wsz        # double-buffered W1/b1/W2 chunks
    tiles = 2 * 2 * tm * dim * isz                         # double-buffered x / out tiles
    scratch = tm * dim * wsz + tm * dim * 4                # xn (w dtype) + f32 accumulator
    interm = tm * th * 4                                   # f32 hidden activations per chunk
    return int(1.3 * (resident + w_chunks + tiles + scratch + interm))


def _choose_hidden_chunk(hidden, tm, dim, x_dtype, w_dtype, budget, max_chunk=4096):
    """Largest lane-aligned divisor of `hidden` whose footprint fits the VMEM budget."""
    if hidden % 128 != 0:
        # Ragged hidden: keep a single full-extent chunk (block == full array extent).
        # TODO(synk): pad hidden (and dim) to multiples of 256 in the wrapper for full
        # MXU occupancy on v6e/v7x instead of running a ragged contraction.
        return hidden
    candidates = [c for c in range(min(hidden, max_chunk), 0, -128) if hidden % c == 0]
    for th in candidates:
        if _estimate_vmem(tm, dim, th, x_dtype, w_dtype) <= budget:
            return th
    return candidates[-1]  # 128


def _row_tile(m, tm_req):
    """Row tile: clamp to M, keep sublane granularity, and (when M allows) guarantee
    >= 2 grid steps so v7x's 2 TensorCores both get work on the 'parallel' axis."""
    tm = min(tm_req, m)
    if m >= 16:
        half = -(-m // 2)             # cdiv(M, 2)
        half = ((half + 7) // 8) * 8  # round up to sublane multiple
        tm = min(tm, half)
    return max(tm, 1)


# ----------------------------- fused PreNorm + FeedForward -----------------------------
def prenorm_ffn_kernel(x_ref, g_ref, bln_ref, w1_ref, b1_ref, w2_ref, b2_ref,
                       o_ref, xn_ref, acc_ref, *, approximate_gelu):
    k = pl.program_id(1)

    @pl.when(k == 0)
    def _():
        # LayerNorm in f32 for stability; store the normalized rows once in the MXU
        # operand dtype (weight dtype) so hidden chunks reuse it without recompute.
        xn = _layernorm_rows(x_ref[...].astype(jnp.float32),
                             g_ref[...].astype(jnp.float32),
                             bln_ref[...].astype(jnp.float32))
        xn_ref[...] = xn.astype(xn_ref.dtype)
        acc_ref[...] = jnp.zeros_like(acc_ref)

    # First matmul over this hidden chunk: bf16 (weight-dtype) operands, f32 accumulation.
    h = jnp.dot(xn_ref[...], w1_ref[...],
                preferred_element_type=jnp.float32) + b1_ref[...].astype(jnp.float32)
    # GELU in f32 (v5e has no bf16 VPU/EUP).  Default tanh approximation -> EUP slot;
    # exact erf (torch default) behind the flag for strict parity.
    h = jax.nn.gelu(h, approximate=approximate_gelu)
    # Dropout p=0.0 -> identity (eval semantics).
    acc_ref[...] += jnp.dot(h.astype(w2_ref.dtype), w2_ref[...],
                            preferred_element_type=jnp.float32)

    @pl.when(k == pl.num_programs(1) - 1)
    def _():
        # Single lane-dense (tm, dim) store per row tile.
        o_ref[...] = (acc_ref[...] + b2_ref[...].astype(jnp.float32)).astype(o_ref.dtype)


@functools.partial(jax.jit, static_argnames=("tm", "approximate_gelu"))
def pre_norm_feedforward(x, gamma, beta, w1, b1, w2, b2, *, tm=512,
                         approximate_gelu=True):
    """PreNorm(dim, FeedForward(dim, hidden)) fused into a single Pallas kernel.

    Pass w1/b1/w2/b2 already converted (once, outside) to the desired MXU dtype
    (bf16 recommended); the kernel accumulates in f32 regardless.
    """
    B, N, dim = x.shape
    hidden = w1.shape[1]
    M = B * N
    x2d = x.reshape(M, dim)

    tm = _row_tile(M, tm)
    budget = _vmem_budget_bytes()
    th = _choose_hidden_chunk(hidden, tm, dim, x.dtype, w1.dtype, budget)
    grid = (pl.cdiv(M, tm), pl.cdiv(hidden, th))

    # Grid-invariant operands: single-buffer so they are not duplicated in VMEM.
    def resident(shape):
        return pl.BlockSpec(shape, lambda i, k: (0,) * len(shape),
                            pipeline_mode=pl.Buffered(1))

    flops = 4 * M * dim * hidden                       # two matmuls, 2 flops/MAC
    transcendentals = M * hidden                       # one tanh/erf per hidden activation
    bytes_accessed = (2 * M * dim) * x.dtype.itemsize + sum(
        int(a.size) * a.dtype.itemsize for a in (gamma, beta, w1, b1, w2, b2))
    cost = pl.CostEstimate(flops=flops, transcendentals=transcendentals,
                           bytes_accessed=bytes_accessed)

    vmem_limit = min(max(_estimate_vmem(tm, dim, th, x.dtype, w1.dtype),
                         32 * 1024 * 1024), budget)

    kernel = functools.partial(prenorm_ffn_kernel, approximate_gelu=approximate_gelu)

    out2d = pl.pallas_call(
        kernel,
        out_shape=jax.ShapeDtypeStruct((M, dim), x.dtype),
        grid_spec=pltpu.PrefetchScalarGridSpec(
            num_scalar_prefetch=0,
            grid=grid,
            in_specs=[
                pl.BlockSpec((tm, dim), lambda i, k: (i, 0)),    # x rows (pipelined)
                resident((1, dim)),                              # LayerNorm gamma
                resident((1, dim)),                              # LayerNorm beta
                pl.BlockSpec((dim, th), lambda i, k: (0, k)),    # W1 hidden chunk
                pl.BlockSpec((1, th), lambda i, k: (0, k)),      # b1 hidden chunk
                pl.BlockSpec((th, dim), lambda i, k: (k, 0)),    # W2 hidden chunk
                resident((1, dim)),                              # b2
            ],
            out_specs=pl.BlockSpec((tm, dim), lambda i, k: (i, 0)),  # resident across k
            scratch_shapes=[
                pltpu.VMEM((tm, dim), w1.dtype),     # normalized rows (MXU operand dtype)
                pltpu.VMEM((tm, dim), jnp.float32),  # f32 accumulator across hidden chunks
            ],
        ),
        compiler_params=pltpu.CompilerParams(
            dimension_semantics=("parallel", "arbitrary"),
            vmem_limit_bytes=int(vmem_limit),
        ),
        cost_estimate=cost,
    )(x2d, gamma, beta, w1, b1, w2, b2)
    return out2d.reshape(B, N, dim)


# ----------------------------- generic PreNorm (arbitrary fn) -----------------------------
def layernorm_kernel(x_ref, g_ref, b_ref, o_ref):
    xn = _layernorm_rows(x_ref[...].astype(jnp.float32),
                         g_ref[...].astype(jnp.float32),
                         b_ref[...].astype(jnp.float32))
    o_ref[...] = xn.astype(o_ref.dtype)


@functools.partial(jax.jit, static_argnames=("tm",))
def layer_norm(x, gamma, beta, *, tm=1024):
    # Pure HBM-bandwidth-bound: big row tiles amortize the ~0.35us per-step overhead.
    B, N, dim = x.shape
    M = B * N
    x2d = x.reshape(M, dim)
    tm = _row_tile(M, tm)
    out2d = pl.pallas_call(
        layernorm_kernel,
        out_shape=jax.ShapeDtypeStruct((M, dim), x.dtype),
        grid_spec=pltpu.PrefetchScalarGridSpec(
            num_scalar_prefetch=0,
            grid=(pl.cdiv(M, tm),),
            in_specs=[
                pl.BlockSpec((tm, dim), lambda i: (i, 0)),
                pl.BlockSpec((1, dim), lambda i: (0, 0), pipeline_mode=pl.Buffered(1)),
                pl.BlockSpec((1, dim), lambda i: (0, 0), pipeline_mode=pl.Buffered(1)),
            ],
            out_specs=pl.BlockSpec((tm, dim), lambda i: (i, 0)),
        ),
        compiler_params=pltpu.CompilerParams(
            dimension_semantics=("parallel",),
            vmem_limit_bytes=_vmem_budget_bytes(),
        ),
    )(x2d, gamma, beta)
    return out2d.reshape(B, N, dim)


def pre_norm(x, gamma, beta, fn, **kwargs):
    """Faithful PreNorm: fn(LayerNorm(x), **kwargs) for an arbitrary JAX callable fn."""
    return fn(layer_norm(x, gamma, beta), **kwargs)


# ----------------------------- params / demo -----------------------------
def init_params(key, dim, hidden_dim, dtype=jnp.float32):
    # LayerNorm: torch defaults (gamma=1, beta=0). Linear: uniform +/- 1/sqrt(fan_in).
    k1, k2, k3, k4 = jax.random.split(key, 4)
    gamma = jnp.ones((1, dim), dtype)
    beta = jnp.zeros((1, dim), dtype)
    lim1 = 1.0 / (dim ** 0.5)
    lim2 = 1.0 / (hidden_dim ** 0.5)
    w1 = jax.random.uniform(k1, (dim, hidden_dim), dtype, -lim1, lim1)
    b1 = jax.random.uniform(k2, (1, hidden_dim), dtype, -lim1, lim1)
    w2 = jax.random.uniform(k3, (hidden_dim, dim), dtype, -lim2, lim2)
    b2 = jax.random.uniform(k4, (1, dim), dtype, -lim2, lim2)
    return gamma, beta, w1, b1, w2, b2


if __name__ == "__main__":
    B, N, dim, hidden_dim = 2, 8, 128, 256
    key = jax.random.PRNGKey(0)
    kx, kp = jax.random.split(key)
    x = jax.random.normal(kx, (B, N, dim), jnp.float32)
    gamma, beta, w1, b1, w2, b2 = init_params(kp, dim, hidden_dim)

    # Convert FFN weights ONCE outside the kernel to bf16 -> full bf16 MXU rate,
    # half the resident weight VMEM.  Accumulation stays f32 inside the kernel.
    w1b, b1b, w2b, b2b = (a.astype(jnp.bfloat16) for a in (w1, b1, w2, b2))

    # Fused PreNorm(LayerNorm + FeedForward) kernel (bf16 MXU operands, tanh GELU).
    out_fused = pre_norm_feedforward(x, gamma, beta, w1b, b1b, w2b, b2b)
    jax.block_until_ready(out_fused)

    # Generic PreNorm path: Pallas LayerNorm kernel, then an arbitrary fn (f32, exact GELU).
    def ffn(z):
        h = jax.nn.gelu(jnp.dot(z.reshape(-1, dim), w1) + b1, approximate=False)
        return (jnp.dot(h, w2) + b2).reshape(z.shape)

    out_generic = pre_norm(x, gamma, beta, ffn)
    jax.block_until_ready(out_generic)

    # --- references ---
    xf = x.reshape(-1, dim).astype(jnp.float32)
    mu = xf.mean(-1, keepdims=True)
    var = ((xf - mu) ** 2).mean(-1, keepdims=True)
    xn = (xf - mu) / jnp.sqrt(var + LN_EPS) * gamma + beta

    # Reference mirroring the fused kernel's precision choices (bf16 operands, f32 acc,
    # tanh GELU).  NOTE: tanh GELU deviates slightly from torch nn.GELU()'s exact erf;
    # use approximate_gelu=False for strict parity.
    h_b = jnp.dot(xn.astype(jnp.bfloat16), w1b,
                  preferred_element_type=jnp.float32) + b1b.astype(jnp.float32)
    h_b = jax.nn.gelu(h_b, approximate=True)
    ref_fused = (jnp.dot(h_b.astype(jnp.bfloat16), w2b, preferred_element_type=jnp.float32)
                 + b2b.astype(jnp.float32)).reshape(B, N, dim)

    # Pure-f32 torch-semantics reference for the generic path.
    h = jax.nn.gelu(jnp.dot(xn, w1) + b1, approximate=False)
    ref_generic = (jnp.dot(h, w2) + b2).reshape(B, N, dim)

    assert jnp.allclose(out_fused, ref_fused, atol=2e-2, rtol=2e-2), \
        "fused PreNorm+FFN mismatch"
    assert jnp.allclose(out_generic, ref_generic, atol=5e-5, rtol=5e-5), \
        "generic PreNorm mismatch"
    print("KERNEL_OK")
</pallas_src>

<mosaic_0001>
module attributes {stable_mosaic.version = 11 : i64} {
  func.func @prenorm_ffn_kernel(%arg0: i32, %arg1: i32, %arg2: memref<8x128xf32, #tpu.memory_space<vmem>>, %arg3: memref<1x128xf32, #tpu.memory_space<vmem>>, %arg4: memref<1x128xf32, #tpu.memory_space<vmem>>, %arg5: memref<128x256xbf16, #tpu.memory_space<vmem>>, %arg6: memref<1x256xbf16, #tpu.memory_space<vmem>>, %arg7: memref<256x128xbf16, #tpu.memory_space<vmem>>, %arg8: memref<1x128xbf16, #tpu.memory_space<vmem>>, %arg9: memref<8x128xf32, #tpu.memory_space<vmem>>, %arg10: memref<8x128xbf16, #tpu.memory_space<vmem>>, %arg11: memref<8x128xf32, #tpu.memory_space<vmem>>) attributes {dimension_semantics = [#tpu.dimension_semantics<parallel>, #tpu.dimension_semantics<arbitrary>], iteration_bounds = array<i64: 2, 1>, scalar_prefetch = 0 : i64, scratch_operands = 2 : i64, tpu.core_type = #tpu.core_type<tc>, window_params = [{transform_indices = @transform_0, window_bounds = array<i64: 8, 128>}, {pipeline_mode = #tpu.pipeline_mode<synchronous>, transform_indices = @transform_1, window_bounds = array<i64: 1, 128>}, {pipeline_mode = #tpu.pipeline_mode<synchronous>, transform_indices = @transform_2, window_bounds = array<i64: 1, 128>}, {transform_indices = @transform_3, window_bounds = array<i64: 128, 256>}, {transform_indices = @transform_4, window_bounds = array<i64: 1, 256>}, {transform_indices = @transform_5, window_bounds = array<i64: 256, 128>}, {pipeline_mode = #tpu.pipeline_mode<synchronous>, transform_indices = @transform_6, window_bounds = array<i64: 1, 128>}, {transform_indices = @transform_7, window_bounds = array<i64: 8, 128>}]} {
    %c0_i32 = arith.constant 0 : i32
    %0 = arith.cmpi eq, %arg1, %c0_i32 : i32
    %1 = arith.extui %0 : i1 to i32
    %c0_i32_0 = arith.constant 0 : i32
    %2 = arith.cmpi ne, %1, %c0_i32_0 : i32
    scf.if %2 {
      %c0_19 = arith.constant 0 : index
      %c0_20 = arith.constant 0 : index
      %32 = vector.load %arg2[%c0_19, %c0_20] : memref<8x128xf32, #tpu.memory_space<vmem>>, vector<8x128xf32>
      %c0_21 = arith.constant 0 : index
      %c0_22 = arith.constant 0 : index
      %33 = vector.load %arg3[%c0_21, %c0_22] : memref<1x128xf32, #tpu.memory_space<vmem>>, vector<1x128xf32>
      %c0_23 = arith.constant 0 : index
      %c0_24 = arith.constant 0 : index
      %34 = vector.load %arg4[%c0_23, %c0_24] : memref<1x128xf32, #tpu.memory_space<vmem>>, vector<1x128xf32>
      %cst_25 = arith.constant dense<0.000000e+00> : vector<8xf32>
      %35 = vector.multi_reduction <add>, %32, %cst_25 [1] : vector<8x128xf32> to vector<8xf32>
      %36 = vector.shape_cast %35 : vector<8xf32> to vector<8x1xf32>
      %cst_26 = arith.constant 1.280000e+02 : f32
      %37 = vector.broadcast %cst_26 : f32 to vector<8x1xf32>
      %38 = arith.divf %36, %37 : vector<8x1xf32>
      %39 = vector.broadcast %38 : vector<8x1xf32> to vector<8x128xf32>
      %40 = arith.subf %32, %39 : vector<8x128xf32>
      %41 = arith.mulf %40, %40 : vector<8x128xf32>
      %cst_27 = arith.constant dense<0.000000e+00> : vector<8xf32>
      %42 = vector.multi_reduction <add>, %41, %cst_27 [1] : vector<8x128xf32> to vector<8xf32>
      %43 = vector.shape_cast %42 : vector<8xf32> to vector<8x1xf32>
      %cst_28 = arith.constant 1.280000e+02 : f32
      %44 = vector.broadcast %cst_28 : f32 to vector<8x1xf32>
      %45 = arith.divf %43, %44 : vector<8x1xf32>
      %cst_29 = arith.constant 9.99999974E-6 : f32
      %46 = vector.broadcast %cst_29 : f32 to vector<8x1xf32>
      %47 = arith.addf %45, %46 : vector<8x1xf32>
      %48 = math.rsqrt %47 : vector<8x1xf32>
      %49 = vector.broadcast %48 : vector<8x1xf32> to vector<8x128xf32>
      %50 = arith.mulf %40, %49 : vector<8x128xf32>
      %51 = vector.broadcast %33 : vector<1x128xf32> to vector<8x128xf32>
      %52 = arith.mulf %50, %51 : vector<8x128xf32>
      %53 = vector.broadcast %34 : vector<1x128xf32> to vector<8x128xf32>
      %54 = arith.addf %52, %53 : vector<8x128xf32>
      %55 = arith.truncf %54 : vector<8x128xf32> to vector<8x128xbf16>
      %c0_30 = arith.constant 0 : index
      %c0_31 = arith.constant 0 : index
      %56 = vector.load %arg10[%c0_30, %c0_31] : memref<8x128xbf16, #tpu.memory_space<vmem>>, vector<8x128xbf16>
      tpu.vector_store %arg10[%c0_30, %c0_31], %55 {strides = array<i32>} : memref<8x128xbf16, #tpu.memory_space<vmem>>, vector<8x128xbf16>,
      %cst_32 = arith.constant 0.000000e+00 : f32
      %57 = vector.broadcast %cst_32 : f32 to vector<8x128xf32>
      %c0_33 = arith.constant 0 : index
      %c0_34 = arith.constant 0 : index
      %58 = vector.load %arg11[%c0_33, %c0_34] : memref<8x128xf32, #tpu.memory_space<vmem>>, vector<8x128xf32>
      tpu.vector_store %arg11[%c0_33, %c0_34], %57 {strides = array<i32>} : memref<8x128xf32, #tpu.memory_space<vmem>>, vector<8x128xf32>,
    } else {
    }
    %c0 = arith.constant 0 : index
    %c0_1 = arith.constant 0 : index
    %3 = vector.load %arg10[%c0, %c0_1] : memref<8x128xbf16, #tpu.memory_space<vmem>>, vector<8x128xbf16>
    %c0_2 = arith.constant 0 : index
    %c0_3 = arith.constant 0 : index
    %4 = vector.load %arg5[%c0_2, %c0_3] : memref<128x256xbf16, #tpu.memory_space<vmem>>, vector<128x256xbf16>
    %cst = arith.constant dense<0.000000e+00> : vector<8x256xf32>
    %5 = tpu.matmul %3, %4, %cst {dimension_numbers = #tpu.dot_dimension_numbers<[1], [0], [0], [1], [0, 0, 1, 1], [], []>} : vector<8x128xbf16>, vector<128x256xbf16>, vector<8x256xf32> -> vector<8x256xf32>
    %c0_4 = arith.constant 0 : index
    %c0_5 = arith.constant 0 : index
    %6 = vector.load %arg6[%c0_4, %c0_5] : memref<1x256xbf16, #tpu.memory_space<vmem>>, vector<1x256xbf16>
    %7 = arith.extf %6 : vector<1x256xbf16> to vector<1x256xf32>
    %8 = vector.broadcast %7 : vector<1x256xf32> to vector<8x256xf32>
    %9 = arith.addf %5, %8 : vector<8x256xf32>
    %10 = arith.mulf %9, %9 : vector<8x256xf32>
    %11 = arith.mulf %9, %10 : vector<8x256xf32>
    %cst_6 = arith.constant 4.471500e-02 : f32
    %12 = vector.broadcast %cst_6 : f32 to vector<8x256xf32>
    %13 = arith.mulf %12, %11 : vector<8x256xf32>
    %14 = arith.addf %9, %13 : vector<8x256xf32>
    %cst_7 = arith.constant 0.797884583 : f32
    %15 = vector.broadcast %cst_7 : f32 to vector<8x256xf32>
    %16 = arith.mulf %15, %14 : vector<8x256xf32>
    %17 = math.tanh %16 : vector<8x256xf32>
    %cst_8 = arith.constant 1.000000e+00 : f32
    %18 = vector.broadcast %cst_8 : f32 to vector<8x256xf32>
    %19 = arith.addf %18, %17 : vector<8x256xf32>
    %cst_9 = arith.constant 5.000000e-01 : f32
    %20 = vector.broadcast %cst_9 : f32 to vector<8x256xf32>
    %21 = arith.mulf %20, %19 : vector<8x256xf32>
    %22 = arith.mulf %9, %21 : vector<8x256xf32>
    %c0_10 = arith.constant 0 : index
    %c0_11 = arith.constant 0 : index
    %23 = vector.load %arg11[%c0_10, %c0_11] : memref<8x128xf32, #tpu.memory_space<vmem>>, vector<8x128xf32>
    %24 = arith.truncf %22 : vector<8x256xf32> to vector<8x256xbf16>
    %c0_12 = arith.constant 0 : index
    %c0_13 = arith.constant 0 : index
    %25 = vector.load %arg7[%c0_12, %c0_13] : memref<256x128xbf16, #tpu.memory_space<vmem>>, vector<256x128xbf16>
    %cst_14 = arith.constant dense<0.000000e+00> : vector<8x128xf32>
    %26 = tpu.matmul %24, %25, %cst_14 {dimension_numbers = #tpu.dot_dimension_numbers<[1], [0], [0], [1], [0, 0, 1, 1], [], []>} : vector<8x256xbf16>, vector<256x128xbf16>, vector<8x128xf32> -> vector<8x128xf32>
    %27 = arith.addf %23, %26 : vector<8x128xf32>
    %c0_15 = arith.constant 0 : index
    %c0_16 = arith.constant 0 : index
    %28 = vector.load %arg11[%c0_15, %c0_16] : memref<8x128xf32, #tpu.memory_space<vmem>>, vector<8x128xf32>
    tpu.vector_store %arg11[%c0_15, %c0_16], %27 {strides = array<i32>} : memref<8x128xf32, #tpu.memory_space<vmem>>, vector<8x128xf32>,
    %c0_i32_17 = arith.constant 0 : i32
    %29 = arith.cmpi eq, %arg1, %c0_i32_17 : i32
    %30 = arith.extui %29 : i1 to i32
    %c0_i32_18 = arith.constant 0 : i32
    %31 = arith.cmpi ne, %30, %c0_i32_18 : i32
    scf.if %31 {
      %c0_19 = arith.constant 0 : index
      %c0_20 = arith.constant 0 : index
      %32 = vector.load %arg11[%c0_19, %c0_20] : memref<8x128xf32, #tpu.memory_space<vmem>>, vector<8x128xf32>
      %c0_21 = arith.constant 0 : index
      %c0_22 = arith.constant 0 : index
      %33 = vector.load %arg8[%c0_21, %c0_22] : memref<1x128xbf16, #tpu.memory_space<vmem>>, vector<1x128xbf16>
      %34 = arith.extf %33 : vector<1x128xbf16> to vector<1x128xf32>
      %35 = vector.broadcast %34 : vector<1x128xf32> to vector<8x128xf32>
      %36 = arith.addf %32, %35 : vector<8x128xf32>
      %c0_23 = arith.constant 0 : index
      %c0_24 = arith.constant 0 : index
      %37 = vector.load %arg9[%c0_23, %c0_24] : memref<8x128xf32, #tpu.memory_space<vmem>>, vector<8x128xf32>
      tpu.vector_store %arg9[%c0_23, %c0_24], %36 {strides = array<i32>} : memref<8x128xf32, #tpu.memory_space<vmem>>, vector<8x128xf32>,
    } else {
    }
    return
  }
  func.func @transform_0(%arg0: i32, %arg1: i32) -> (i32, i32) {
    %c0_i32 = arith.constant 0 : i32
    %c0_i32_0 = arith.constant 0 : i32
    return %arg0, %c0_i32 : i32, i32
  }
  func.func @transform_1(%arg0: i32, %arg1: i32) -> (i32, i32) {
    %c0_i32 = arith.constant 0 : i32
    %c0_i32_0 = arith.constant 0 : i32
    %c0_i32_1 = arith.constant 0 : i32
    return %c0_i32, %c0_i32_0 : i32, i32
  }
  func.func @transform_2(%arg0: i32, %arg1: i32) -> (i32, i32) {
    %c0_i32 = arith.constant 0 : i32
    %c0_i32_0 = arith.constant 0 : i32
    %c0_i32_1 = arith.constant 0 : i32
    return %c0_i32, %c0_i32_0 : i32, i32
  }
  func.func @transform_3(%arg0: i32, %arg1: i32) -> (i32, i32) {
    %c0_i32 = arith.constant 0 : i32
    %c0_i32_0 = arith.constant 0 : i32
    return %c0_i32, %arg1 : i32, i32
  }
  func.func @transform_4(%arg0: i32, %arg1: i32) -> (i32, i32) {
    %c0_i32 = arith.constant 0 : i32
    %c0_i32_0 = arith.constant 0 : i32
    return %c0_i32, %arg1 : i32, i32
  }
  func.func @transform_5(%arg0: i32, %arg1: i32) -> (i32, i32) {
    %c0_i32 = arith.constant 0 : i32
    %c0_i32_0 = arith.constant 0 : i32
    return %arg1, %c0_i32 : i32, i32
  }
  func.func @transform_6(%arg0: i32, %arg1: i32) -> (i32, i32) {
    %c0_i32 = arith.constant 0 : i32
    %c0_i32_0 = arith.constant 0 : i32
    %c0_i32_1 = arith.constant 0 : i32
    return %c0_i32, %c0_i32_0 : i32, i32
  }
  func.func @transform_7(%arg0: i32, %arg1: i32) -> (i32, i32) {
    %c0_i32 = arith.constant 0 : i32
    %c0_i32_0 = arith.constant 0 : i32
    return %arg0, %c0_i32 : i32, i32
  }
}

</mosaic_0001>

<llo_original>
// kernel: pre_norm_feedforward.1
$region0: #{pre_norm_feedforward.1}
  #allocation0 [shape = 'u32[]', space=smem, size = 0x4, offset = 0x4, fixed_abs, tag = 'smem constant byte address 0x4 - core index']
  #allocation1 [shape = 'u32[144,128]{1,0:T(1,128)}', space=vmem, size = 0x12000, scoped, tag = 'internal scratch']
  #allocation2 [shape = 'bf16[8,128]{1,0:T(8,128)(2,1)}', space=vmem, size = 0x800, scoped, tag = 'scratch operand']
  #allocation3 [shape = 'f32[8,128]{1,0:T(8,128)}', space=vmem, size = 0x1000, scoped, tag = 'scratch operand']
  %s0 = inlined_call_operand.hbm [shape: f32[16,128], index: 0, kind: input, shape index: {}]
  %s1 = inlined_call_operand.vmem [shape: f32[1,128], index: 1, kind: input, shape index: {}]
  %s2 = inlined_call_operand.vmem [shape: f32[1,128], index: 2, kind: input, shape index: {}]
  %s3 = inlined_call_operand.hbm [shape: bf16[128,256], index: 3, kind: input, shape index: {}]
  %s4 = inlined_call_operand.vmem [shape: bf16[1,256], index: 4, kind: input, shape index: {}]
  %s5 = inlined_call_operand.hbm [shape: bf16[256,128], index: 5, kind: input, shape index: {}]
  %s6 = inlined_call_operand.vmem [shape: bf16[1,128], index: 6, kind: input, shape index: {}]
  %s7 = inlined_call_operand.hbm [shape: f32[16,128], index: 7, kind: output, shape index: {}]
  %s8 = sld [smem:[#allocation0]]
  $region81: #{pre_norm_feedforward.1} parent=0
    _
  %s10 = ssub.s32 1, %s8
  %s11 = scalar_select 0, %s10, %s8
  $region1: #{pre_norm_feedforward.1} parent=0
    #allocation4 [shape = 'u8[8192]{0}', space=vmem, size = 0x2000, scoped, tag = 'input window, operand 0']
    #allocation5 [shape = 's32[2]{0}', space=sflag, size = 0x8, scoped, tag = 'scoped memory for pre_norm_feedforward.1']
    #allocation6 [shape = 's32[2]{0}', space=sflag, size = 0x8, scoped, tag = 'scoped memory for pre_norm_feedforward.1']
    #allocation7 [shape = 'u8[65536]{0}', space=vmem, size = 0x10000, scoped, tag = 'input window, operand 3, single buffered']
    #allocation8 [shape = 's32[1]{0}', space=sflag, size = 0x4, scoped, tag = 'scoped memory for pre_norm_feedforward.1']
    #allocation9 [shape = 'u8[65536]{0}', space=vmem, size = 0x10000, scoped, tag = 'input window, operand 5, single buffered']
    #allocation10 [shape = 'u8[8192]{0}', space=vmem, size = 0x2000, scoped, tag = 'output window, operand 0']
    %12 = vsyncpa [#allocation5], 0
    %s13 = scalar_lea.sflag [#allocation5], 1
    %14 = vsyncpa %s13, 0
    %15 = vsyncpa [#allocation8], 0
    %16 = vsyncpa [#allocation6], 0
    %s17 = scalar_lea.sflag [#allocation6], 1
    %18 = vsyncpa %s17, 0
    loop: start=0, step=1, limit=4
    $region2: #{pre_norm_feedforward.1} parent=1 // loop_pre_header
      _
    $region3: #{pre_norm_feedforward.1} parent=1 // loop_header
      %s20 = sphi 0, %s24
      %p21 = scmp.ge.s32.totalorder %s20, 4
      %s27 = sphi 0, %s39
      %s28 = sphi 0, %s35
      %s29 = sphi 0, %s27
      %s30 = sphi 0, %s28
      %s31 = sphi 0, %s29
      %s32 = sphi 0, %s30
      %s42 = sphi 0, %s44
      %s45 = sphi 0, %s42
      %s46 = sphi 0, %s45
      %s62 = sphi 0, %s46
      %s66 = sphi 0, %s66
      %s68 = sphi 0, %s66
      %s69 = sphi 0, %s68
      %s83 = sphi 0, %s69
      %s87 = sphi 0, %s87
      %s89 = sphi 0, %s87
      %s90 = sphi 0, %s89
      %s104 = sphi 0, %s90
      %s110 = sphi 0, %s112
      %s113 = sphi 0, %s110
      %s114 = sphi 0, %s113
      %s130 = sphi 0, %s114
      %s136 = sphi 0, %s138
      %s139 = sphi 0, %s136
      %s140 = sphi 0, %s139
      %s156 = sphi 0, %s140
      %s162 = sphi 0, %s164
      %s165 = sphi 0, %s162
      %s166 = sphi 0, %s165
      %s182 = sphi 0, %s166
      %s186 = sphi 0, %s186
      %s188 = sphi 0, %s186
      %s189 = sphi 0, %s188
      %s203 = sphi 0, %s189
      %s209 = sphi 0, %s211
      %s212 = sphi 0, %s209
      %s213 = sphi 0, %s212
      %s229 = sphi 0, %s213
    $region4: #{pre_norm_feedforward.1} parent=1 // loop_header_branch
      %23 = sbr.rel (%p21) target = $region8
    $region5: #{pre_norm_feedforward.1} parent=1 // loop_body
      %s25 = ssub.s32 %s20, 1
      %s26 = ssub.s32 %s20, 2
      %s33 = sadd.s32 1, %s28
      %p34 = scmp.ge.s32.totalorder %s33, 1
      %s35 = scalar_select %p34, 0, %s33
      %s36 = sadd.s32 1, %s27
      %s37 = scalar_select %p34, %s36, %s27
      %p38 = scmp.ge.s32.totalorder %s37, 2
      %s39 = scalar_select %p38, 0, %s37
      %s40 = ssub.s32 %s27, %s39
      %p41 = scmp.eq.s32.totalorder %s40, 0
      %s43 = sadd.s32 %s42, 1
      %s44 = scalar_select %p41, %s42, %s43
      %p47 = pneg %p41
      %p48 = scmp.eq.s32.totalorder %s20, 1
      %p49 = por %p47, %p48
      %p50 = scmp.ne.s32.totalorder %s42, %s45
      %p51 = scmp.eq.s32.totalorder %s20, 0
      %p52 = por %p50, %p51
      %p53 = scmp.ne.s32.totalorder %s42, %s45
      %p54 = scmp.eq.s32.totalorder %s25, 1
      %p55 = por %p53, %p54
      %p56 = scmp.ne.s32.totalorder %s45, %s46
      %p57 = scmp.eq.s32.totalorder %s25, 0
      %p58 = por %p56, %p57
      %p59 = scmp.ne.s32.totalorder %s45, %s46
      %p60 = scmp.eq.s32.totalorder %s26, 1
      %p61 = por %p59, %p60
      %p63 = scmp.ne.s32.totalorder %s46, %s62
      %p64 = scmp.eq.s32.totalorder %s26, 0
      %p65 = por %p63, %p64
      %s67 = sadd.s32 %s66, 1
      %p70 = scmp.eq.s32.totalorder %s20, 1
      %p71 = scmp.ne.s32.totalorder %s66, %s68
      %p72 = scmp.eq.s32.totalorder %s20, 0
      %p73 = por %p71, %p72
      %p74 = scmp.ne.s32.totalorder %s66, %s68
      %p75 = scmp.eq.s32.totalorder %s25, 1
      %p76 = por %p74, %p75
      %p77 = scmp.ne.s32.totalorder %s68, %s69
      %p78 = scmp.eq.s32.totalorder %s25, 0
      %p79 = por %p77, %p78
      %p80 = scmp.ne.s32.totalorder %s68, %s69
      %p81 = scmp.eq.s32.totalorder %s26, 1
      %p82 = por %p80, %p81
      %p84 = scmp.ne.s32.totalorder %s69, %s83
      %p85 = scmp.eq.s32.totalorder %s26, 0
      %p86 = por %p84, %p85
      %s88 = sadd.s32 %s87, 1
      %p91 = scmp.eq.s32.totalorder %s20, 1
      %p92 = scmp.ne.s32.totalorder %s87, %s89
      %p93 = scmp.eq.s32.totalorder %s20, 0
      %p94 = por %p92, %p93
      %p95 = scmp.ne.s32.totalorder %s87, %s89
      %p96 = scmp.eq.s32.totalorder %s25, 1
      %p97 = por %p95, %p96
      %p98 = scmp.ne.s32.totalorder %s89, %s90
      %p99 = scmp.eq.s32.totalorder %s25, 0
      %p100 = por %p98, %p99
      %p101 = scmp.ne.s32.totalorder %s89, %s90
      %p102 = scmp.eq.s32.totalorder %s26, 1
      %p103 = por %p101, %p102
      %p105 = scmp.ne.s32.totalorder %s90, %s104
      %p106 = scmp.eq.s32.totalorder %s26, 0
      %p107 = por %p105, %p106
      %s108 = ssub.s32 %s28, %s35
      %p109 = scmp.eq.s32.totalorder %s108, 0
      %s111 = sadd.s32 %s110, 1
      %s112 = scalar_select %p109, %s110, %s111
      %p115 = pneg %p109
      %p116 = scmp.eq.s32.totalorder %s20, 1
      %p117 = por %p115, %p116
      %p118 = scmp.ne.s32.totalorder %s110, %s113
      %p119 = scmp.eq.s32.totalorder %s20, 0
      %p120 = por %p118, %p119
      %p121 = scmp.ne.s32.totalorder %s110, %s113
      %p122 = scmp.eq.s32.totalorder %s25, 1
      %p123 = por %p121, %p122
      %p124 = scmp.ne.s32.totalorder %s113, %s114
      %p125 = scmp.eq.s32.totalorder %s25, 0
      %p126 = por %p124, %p125
      %p127 = scmp.ne.s32.totalorder %s113, %s114
      %p128 = scmp.eq.s32.totalorder %s26, 1
      %p129 = por %p127, %p128
      %p131 = scmp.ne.s32.totalorder %s114, %s130
      %p132 = scmp.eq.s32.totalorder %s26, 0
      %p133 = por %p131, %p132
      %s134 = ssub.s32 %s28, %s35
      %p135 = scmp.eq.s32.totalorder %s134, 0
      %s137 = sadd.s32 %s136, 1
      %s138 = scalar_select %p135, %s136, %s137
      %p141 = pneg %p135
      %p142 = scmp.eq.s32.totalorder %s20, 1
      %p143 = por %p141, %p142
      %p144 = scmp.ne.s32.totalorder %s136, %s139
      %p145 = scmp.eq.s32.totalorder %s20, 0
      %p146 = por %p144, %p145
      %p147 = scmp.ne.s32.totalorder %s136, %s139
      %p148 = scmp.eq.s32.totalorder %s25, 1
      %p149 = por %p147, %p148
      %p150 = scmp.ne.s32.totalorder %s139, %s140
      %p151 = scmp.eq.s32.totalorder %s25, 0
      %p152 = por %p150, %p151
      %p153 = scmp.ne.s32.totalorder %s139, %s140
      %p154 = scmp.eq.s32.totalorder %s26, 1
      %p155 = por %p153, %p154
      %p157 = scmp.ne.s32.totalorder %s140, %s156
      %p158 = scmp.eq.s32.totalorder %s26, 0
      %p159 = por %p157, %p158
      %s160 = ssub.s32 %s28, %s35
      %p161 = scmp.eq.s32.totalorder %s160, 0
      %s163 = sadd.s32 %s162, 1
      %s164 = scalar_select %p161, %s162, %s163
      %p167 = pneg %p161
      %p168 = scmp.eq.s32.totalorder %s20, 1
      %p169 = por %p167, %p168
      %p170 = scmp.ne.s32.totalorder %s162, %s165
      %p171 = scmp.eq.s32.totalorder %s20, 0
      %p172 = por %p170, %p171
      %p173 = scmp.ne.s32.totalorder %s162, %s165
      %p174 = scmp.eq.s32.totalorder %s25, 1
      %p175 = por %p173, %p174
      %p176 = scmp.ne.s32.totalorder %s165, %s166
      %p177 = scmp.eq.s32.totalorder %s25, 0
      %p178 = por %p176, %p177
      %p179 = scmp.ne.s32.totalorder %s165, %s166
      %p180 = scmp.eq.s32.totalorder %s26, 1
      %p181 = por %p179, %p180
      %p183 = scmp.ne.s32.totalorder %s166, %s182
      %p184 = scmp.eq.s32.totalorder %s26, 0
      %p185 = por %p183, %p184
      %s187 = sadd.s32 %s186, 1
      %p190 = scmp.eq.s32.totalorder %s20, 1
      %p191 = scmp.ne.s32.totalorder %s186, %s188
      %p192 = scmp.eq.s32.totalorder %s20, 0
      %p193 = por %p191, %p192
      %p194 = scmp.ne.s32.totalorder %s186, %s188
      %p195 = scmp.eq.s32.totalorder %s25, 1
      %p196 = por %p194, %p195
      %p197 = scmp.ne.s32.totalorder %s188, %s189
      %p198 = scmp.eq.s32.totalorder %s25, 0
      %p199 = por %p197, %p198
      %p200 = scmp.ne.s32.totalorder %s188, %s189
      %p201 = scmp.eq.s32.totalorder %s26, 1
      %p202 = por %p200, %p201
      %p204 = scmp.ne.s32.totalorder %s189, %s203
      %p205 = scmp.eq.s32.totalorder %s26, 0
      %p206 = por %p204, %p205
      %s207 = ssub.s32 %s27, %s39
      %p208 = scmp.eq.s32.totalorder %s207, 0
      %s210 = sadd.s32 %s209, 1
      %s211 = scalar_select %p208, %s209, %s210
      %p214 = pneg %p208
      %p215 = scmp.eq.s32.totalorder %s20, 1
      %p216 = por %p214, %p215
      %p217 = scmp.ne.s32.totalorder %s209, %s212
      %p218 = scmp.eq.s32.totalorder %s20, 0
      %p219 = por %p217, %p218
      %p220 = scmp.ne.s32.totalorder %s209, %s212
      %p221 = scmp.eq.s32.totalorder %s25, 1
      %p222 = por %p220, %p221
      %p223 = scmp.ne.s32.totalorder %s212, %s213
      %p224 = scmp.eq.s32.totalorder %s25, 0
      %p225 = por %p223, %p224
      %p226 = scmp.ne.s32.totalorder %s212, %s213
      %p227 = scmp.eq.s32.totalorder %s26, 1
      %p228 = por %p226, %p227
      %p230 = scmp.ne.s32.totalorder %s213, %s229
      %p231 = scmp.eq.s32.totalorder %s26, 0
      %p232 = por %p230, %p231
      %p233 = scmp.le.s32.totalorder 1, %s20
      %p234 = scmp.lt.s32.totalorder %s20, 3
      %p235 = pnand %p233, %p234
      %p236 = pneg %p235
      // Predicated region
      $region9: #{pre_norm_feedforward.1} parent=5 // pred_check
        _
      $region10: #{pre_norm_feedforward.1} parent=5 // pred_check_branch
        %238 = sbr.rel (%p235) target = $region12
      $region11: #{pre_norm_feedforward.1} parent=5 // pred_region
        %s239 = ssub.s32 %s20, 1
        // Predicated region
        $region13: #{pre_norm_feedforward.1} parent=11 // pred_check
          %p240 = pneg %p79
        $region14: #{pre_norm_feedforward.1} parent=11 // pred_check_branch
          %242 = sbr.rel (%p240) target = $region16
        $region15: #{pre_norm_feedforward.1} parent=11 // pred_region
          _
        $region16: #{pre_norm_feedforward.1} parent=11 // pred_fallthru
          _
        // Predicated region
        $region17: #{pre_norm_feedforward.1} parent=11 // pred_check
          %p243 = pneg %p100
        $region18: #{pre_norm_feedforward.1} parent=11 // pred_check_branch
          %245 = sbr.rel (%p243) target = $region20
        $region19: #{pre_norm_feedforward.1} parent=11 // pred_region
          _
        $region20: #{pre_norm_feedforward.1} parent=11 // pred_fallthru
          _
        // Predicated region
        $region21: #{pre_norm_feedforward.1} parent=11 // pred_check
          %p246 = pneg %p126
        $region22: #{pre_norm_feedforward.1} parent=11 // pred_check_branch
          %248 = sbr.rel (%p246) target = $region24
        $region23: #{pre_norm_feedforward.1} parent=11 // pred_region
          %s249 = smul.u32 2, %s30
          %s251 = ssub.s32 2048, 2048
          %252 = vsyncadd [#allocation8], %s251
          %s253 = smul.addr %s249, 64
          %s254 = scalar_lea.hbm %s3, %s253
          %s255 = sshll.u32 [#allocation7], 4
          %s256 = int_to_ptr.vmem [resolvable:$true] %s255
          %261 = dma.hbm_to_vmem [thread:$0]  %s254, 2048, %s256, [#allocation8], 128, 128, 8
        $region24: #{pre_norm_feedforward.1} parent=11 // pred_fallthru
          _
        // Predicated region
        $region25: #{pre_norm_feedforward.1} parent=11 // pred_check
          %p262 = pneg %p152
        $region26: #{pre_norm_feedforward.1} parent=11 // pred_check_branch
          %264 = sbr.rel (%p262) target = $region28
        $region27: #{pre_norm_feedforward.1} parent=11 // pred_region
          %s265 = smul.u32 2, %s30
          %p266 = scmp.lt.s32.totalorder %s265, 1
          %s267 = scalar_select %p266, %s265, 1
          %s268 = scalar_lea.vmem %s4, %s267
          %s269 = smul.u32 2, %s30
        $region28: #{pre_norm_feedforward.1} parent=11 // pred_fallthru
          _
        // Predicated region
        $region29: #{pre_norm_feedforward.1} parent=11 // pred_check
          %p270 = pneg %p178
        $region30: #{pre_norm_feedforward.1} parent=11 // pred_check_branch
          %272 = sbr.rel (%p270) target = $region32
        $region31: #{pre_norm_feedforward.1} parent=11 // pred_region
          %s273 = smul.u32 32, %s30
          %s275 = ssub.s32 2048, 2048
          %276 = vsyncadd [#allocation8], %s275
          %s277 = smul.addr %s273, 64
          %s278 = scalar_lea.hbm %s5, %s277
          %s279 = sshll.u32 [#allocation9], 4
          %s280 = int_to_ptr.vmem [resolvable:$true] %s279
          %285 = dma.hbm_to_vmem [thread:$0]  %s278, 2048, %s280, [#allocation8], 64, 64, 4
        $region32: #{pre_norm_feedforward.1} parent=11 // pred_fallthru
          _
        // Predicated region
        $region33: #{pre_norm_feedforward.1} parent=11 // pred_check
          %p286 = pneg %p199
        $region34: #{pre_norm_feedforward.1} parent=11 // pred_check_branch
          %288 = sbr.rel (%p286) target = $region36
        $region35: #{pre_norm_feedforward.1} parent=11 // pred_region
          _
        $region36: #{pre_norm_feedforward.1} parent=11 // pred_fallthru
          _
      $region12: #{pre_norm_feedforward.1} parent=5 // pred_fallthru
        _
      %p289 = scmp.lt.s32.totalorder %s20, 2
      // Predicated region
      $region37: #{pre_norm_feedforward.1} parent=5 // pred_check
        %p290 = pneg %p289
      $region38: #{pre_norm_feedforward.1} parent=5 // pred_check_branch
        %292 = sbr.rel (%p290) target = $region40
      $region39: #{pre_norm_feedforward.1} parent=5 // pred_region
        // Predicated region
        $region41: #{pre_norm_feedforward.1} parent=39 // pred_check
          %p293 = pneg %p52
        $region42: #{pre_norm_feedforward.1} parent=39 // pred_check_branch
          %295 = sbr.rel (%p293) target = $region44
        $region43: #{pre_norm_feedforward.1} parent=39 // pred_region
          %s296 = sand.u32 %s42, 1
          %s297 = scalar_lea.sflag [#allocation5], %s296
          %s298 = sand.u32 %s42, 1
          %s299 = smul.addr %s298, 8
          %s300 = scalar_lea.vmem [#allocation4], %s299
          %s302 = ssub.s32 128, 128
          %303 = vsyncadd %s297, %s302
          %s304 = smul.addr %s27, 128
          %s305 = scalar_lea.hbm %s0, %s304
          %s307 = sshll.u32 %s300, 4
          %s308 = int_to_ptr.vmem [resolvable:$true] %s307
          %310 = dma.hbm_to_vmem [thread:$0]  %s305, 128, %s308, %s297
        $region44: #{pre_norm_feedforward.1} parent=39 // pred_fallthru
          _
      $region40: #{pre_norm_feedforward.1} parent=5 // pred_fallthru
        _
      %p311 = scmp.le.s32.totalorder 1, %s20
      %p312 = scmp.lt.s32.totalorder %s20, 3
      %p313 = pnand %p311, %p312
      %p314 = pneg %p313
      // Predicated region
      $region45: #{pre_norm_feedforward.1} parent=5 // pred_check
        _
      $region46: #{pre_norm_feedforward.1} parent=5 // pred_check_branch
        %316 = sbr.rel (%p313) target = $region48
      $region47: #{pre_norm_feedforward.1} parent=5 // pred_region
        %s317 = ssub.s32 %s20, 1
        %s318 = sand.u32 %s45, 1
        %s319 = scalar_lea.sflag [#allocation5], %s318
        %s320 = sand.u32 %s45, 1
        %s321 = smul.addr %s320, 8
        %s322 = scalar_lea.vmem [#allocation4], %s321
        // Predicated region
        $region49: #{pre_norm_feedforward.1} parent=47 // pred_check
          %p323 = pneg %p58
        $region50: #{pre_norm_feedforward.1} parent=47 // pred_check_branch
          %325 = sbr.rel (%p323) target = $region52
        $region51: #{pre_norm_feedforward.1} parent=47 // pred_region
          %326 = dma.done %s319, 128
        $region52: #{pre_norm_feedforward.1} parent=47 // pred_fallthru
          _
        // Predicated region
        $region53: #{pre_norm_feedforward.1} parent=47 // pred_check
          %p327 = pneg %p126
        $region54: #{pre_norm_feedforward.1} parent=47 // pred_check_branch
          %329 = sbr.rel (%p327) target = $region56
        $region55: #{pre_norm_feedforward.1} parent=47 // pred_region
          %330 = dma.done [#allocation8], 2048
        $region56: #{pre_norm_feedforward.1} parent=47 // pred_fallthru
          _
        // Predicated region
        $region57: #{pre_norm_feedforward.1} parent=47 // pred_check
          %p331 = pneg %p178
        $region58: #{pre_norm_feedforward.1} parent=47 // pred_check_branch
          %333 = sbr.rel (%p331) target = $region60
        $region59: #{pre_norm_feedforward.1} parent=47 // pred_region
          %334 = dma.done [#allocation8], 2048
        $region60: #{pre_norm_feedforward.1} parent=47 // pred_fallthru
          _
        %s335 = sand.u32 %s45, 1
        %s336 = scalar_lea.sflag [#allocation5], %s335
        %s337 = sand.u32 %s45, 1
        %s338 = smul.addr %s337, 8
        %s339 = scalar_lea.vmem [#allocation4], %s338
        %p340 = pneg %p58
        %p341 = pneg %p55
        %p342 = pneg %p79
        %p343 = pneg %p76
        %p344 = pneg %p100
        %p345 = pneg %p97
        %p346 = pneg %p126
        %p347 = pneg %p123
        %s348 = smul.u32 2, %s30
        %p349 = scmp.lt.s32.totalorder %s348, 1
        %s350 = scalar_select %p349, %s348, 1
        %s351 = scalar_lea.vmem %s4, %s350
        %p352 = pneg %p152
        %p353 = pneg %p149
        %p354 = pneg %p178
        %p355 = pneg %p175
        %p356 = pneg %p199
        %p357 = pneg %p196
        %p358 = pneg %p225
        %p359 = pneg %p222
        %s360 = sand.u32 %s212, 1
        %s361 = scalar_lea.sflag [#allocation6], %s360
        %s362 = sand.u32 %s212, 1
        %s363 = smul.addr %s362, 8
        %s364 = scalar_lea.vmem [#allocation10], %s363
        %s365 = smul.u32 2, %s30
        %s366 = smul.u32 2, %s30
        %p367 = scmp.lt.s32.totalorder %s366, 1
        %s368 = scalar_select %p367, %s366, 1
        %s369 = scalar_lea.vmem %s4, %s368
        %s370 = smul.u32 2, %s30
        %s371 = smul.u32 32, %s30
        %p373 = scmp.eq.s32.totalorder %s30, 0
        // Predicated region
        $region61: #{pre_norm_feedforward.1} parent=47 // pred_check
          %p374 = pneg %p373
        $region62: #{pre_norm_feedforward.1} parent=47 // pred_check_branch
          %376 = sbr.rel (%p374) target = $region64
        $region63: #{pre_norm_feedforward.1} parent=47 // pred_region
          %v377 = vld [vmem:[%s322] sm:$0xff]
          %v378 = vld [vmem:[%s1] sm:$0x1]
          %v379 = vld [vmem:[%s2] sm:$0x1]
          %380 = vadd.xlane.f32.xlu0 %v377
          %v381 = vpop.xlane.xlu0 %380
          %v382 = vrcp.pop 128.0
          %v383 = vmul.f32 %v381, %v382
          %v384 = vsub.f32 %v377, %v383
          %v385 = vmul.f32 %v384, %v384
          %386 = vadd.xlane.f32.xlu0 %v385
          %v387 = vpop.xlane.xlu0 %386
          %v388 = vmul.f32 %v387, %v382
          %v389 = vadd.f32 %v388, 1e-05
          %v390 = vrsqrt.pop %v389
          %v391 = vmul.f32 %v384, %v390
          %v393 = vlaneseq
          %v394 = vshrl.u32 %v393, 7
          %v395 = vsub.s32 0, %v394
          %v396 = vrot.slane %v378, %v395
          %v398 = vmul.f32 %v391, %v396
          %v400 = vlaneseq
          %v401 = vshrl.u32 %v400, 7
          %v402 = vsub.s32 0, %v401
          %v403 = vrot.slane %v379, %v402
          %v405 = vadd.f32 %v398, %v403
          %v406 = vpack.c.bf16 %v405, %v405
          %407 = vst [vmem:[#allocation2] sm:$0xf] %v406
          %408 = vst [vmem:[#allocation3] sm:$0xff] 0.0
        $region64: #{pre_norm_feedforward.1} parent=47 // pred_fallthru
          _
        %v409 = vld [vmem:[#allocation2] sm:$0xf]
        %v410 = vld [vmem:[#allocation7] sm:$0xff]
        %v411 = vld [vmem:[#allocation7 + $0x8] sm:$0xff]
        %v412 = vld [vmem:[#allocation7 + $0x10] sm:$0xff]
        %v413 = vld [vmem:[#allocation7 + $0x18] sm:$0xff]
        %v414 = vld [vmem:[#allocation7 + $0x20] sm:$0xff]
        %v415 = vld [vmem:[#allocation7 + $0x28] sm:$0xff]
        %v416 = vld [vmem:[#allocation7 + $0x30] sm:$0xff]
        %v417 = vld [vmem:[#allocation7 + $0x38] sm:$0xff]
        %v418 = vld [vmem:[#allocation7 + $0x40] sm:$0xff]
        %v419 = vld [vmem:[#allocation7 + $0x48] sm:$0xff]
        %v420 = vld [vmem:[#allocation7 + $0x50] sm:$0xff]
        %v421 = vld [vmem:[#allocation7 + $0x58] sm:$0xff]
        %v422 = vld [vmem:[#allocation7 + $0x60] sm:$0xff]
        %v423 = vld [vmem:[#allocation7 + $0x68] sm:$0xff]
        %v424 = vld [vmem:[#allocation7 + $0x70] sm:$0xff]
        %v425 = vld [vmem:[#allocation7 + $0x78] sm:$0xff]
        %v426 = vld [vmem:[%s369] sm:$0x3]
        %v427 = vunpack.c.l.bf16 %v426
        %v429 = vlaneseq
        %v430 = vshrl.u32 %v429, 7
        %v431 = vsub.s32 0, %v430
        %v432 = vrot.slane %v427, %v431
        %v433 = vlaneseq
        %v434 = vshrl.u32 %v433, 7
        %v435 = vsub.s32 2, %v434
        %v436 = vrot.slane %v427, %v435
        %v439 = vlaneseq
        %v440 = vshrl.u32 %v439, 7
        %v441 = vsub.s32 0, %v440
        %v442 = vrot.slane %v432, %v441
        %v443 = vlaneseq
        %v444 = vshrl.u32 %v443, 7
        %v445 = vsub.s32 0, %v444
        %v446 = vrot.slane %v436, %v445
        %v463 = vunpack.c.l.b16 %v410
        %v464 = vunpack.c.h.b16 %v410
        %v465 = vunpack.c.l.b16 %v411
        %v466 = vunpack.c.h.b16 %v411
        %v467 = vunpack.c.l.b16 %v412
        %v468 = vunpack.c.h.b16 %v412
        %v469 = vunpack.c.l.b16 %v413
        %v470 = vunpack.c.h.b16 %v413
        %v471 = vunpack.c.l.b16 %v414
        %v472 = vunpack.c.h.b16 %v414
        %v473 = vunpack.c.l.b16 %v415
        %v474 = vunpack.c.h.b16 %v415
        %v475 = vunpack.c.l.b16 %v416
        %v476 = vunpack.c.h.b16 %v416
        %v477 = vunpack.c.l.b16 %v417
        %v478 = vunpack.c.h.b16 %v417
        %v479 = vunpack.c.l.b16 %v418
        %v480 = vunpack.c.h.b16 %v418
        %v481 = vunpack.c.l.b16 %v419
        %v482 = vunpack.c.h.b16 %v419
        %v483 = vunpack.c.l.b16 %v420
        %v484 = vunpack.c.h.b16 %v420
        %v485 = vunpack.c.l.b16 %v421
        %v486 = vunpack.c.h.b16 %v421
        %v487 = vunpack.c.l.b16 %v422
        %v488 = vunpack.c.h.b16 %v422
        %v489 = vunpack.c.l.b16 %v423
        %v490 = vunpack.c.h.b16 %v423
        %v491 = vunpack.c.l.b16 %v424
        %v492 = vunpack.c.h.b16 %v424
        %v493 = vunpack.c.l.b16 %v425
        %v494 = vunpack.c.h.b16 %v425
        %v495 = vpack.c.b16 %v465, %v463
        %v496 = vpack.c.b16 %v466, %v464
        %v497 = vpack.c.b16 %v469, %v467
        %v498 = vpack.c.b16 %v470, %v468
        %v499 = vpack.c.b16 %v473, %v471
        %v500 = vpack.c.b16 %v474, %v472
        %v501 = vpack.c.b16 %v477, %v475
        %v502 = vpack.c.b16 %v478, %v476
        %v503 = vpack.c.b16 %v481, %v479
        %v504 = vpack.c.b16 %v482, %v480
        %v505 = vpack.c.b16 %v485, %v483
        %v506 = vpack.c.b16 %v486, %v484
        %v507 = vpack.c.b16 %v489, %v487
        %v508 = vpack.c.b16 %v490, %v488
        %v509 = vpack.c.b16 %v493, %v491
        %v510 = vpack.c.b16 %v494, %v492
        %527 = vmatprep.subr.bf16.mxu0 %v496
        %528 = vmatpush1.bf16.msra.mxu0 %v495
        %529 = vmatprep.subr.bf16.mxu0 %v498
        %530 = vmatpush1.bf16.msra.mxu0 %v497
        %531 = vmatprep.subr.bf16.mxu0 %v500
        %532 = vmatpush1.bf16.msra.mxu0 %v499
        %533 = vmatprep.subr.bf16.mxu0 %v502
        %534 = vmatpush1.bf16.msra.mxu0 %v501
        %535 = vmatprep.subr.bf16.mxu0 %v504
        %536 = vmatpush1.bf16.msra.mxu0 %v503
        %537 = vmatprep.subr.bf16.mxu0 %v506
        %538 = vmatpush1.bf16.msra.mxu0 %v505
        %539 = vmatprep.subr.bf16.mxu0 %v508
        %540 = vmatpush1.bf16.msra.mxu0 %v507
        %541 = vmatprep.subr.bf16.mxu0 %v510
        %542 = vmatpush1.bf16.msra.mxu0 %v509
        %543 = vmatprep.subr.bf16.mxu0 0
        %544 = vmatpush1.bf16.msra.mxu0 0
        %545 = vmatprep.subr.bf16.mxu0 0
        %546 = vmatpush1.bf16.msra.mxu0 0
        %547 = vmatprep.subr.bf16.mxu0 0
        %548 = vmatpush1.bf16.msra.mxu0 0
        %549 = vmatprep.subr.bf16.mxu0 0
        %550 = vmatpush1.bf16.msra.mxu0 0
        %551 = vmatprep.subr.bf16.mxu0 0
        %552 = vmatpush1.bf16.msra.mxu0 0
        %553 = vmatprep.subr.bf16.mxu0 0
        %554 = vmatpush1.bf16.msra.mxu0 0
        %555 = vmatprep.subr.bf16.mxu0 0
        %556 = vmatpush1.bf16.msra.mxu0 0
        %557 = vmatprep.subr.bf16.mxu0 0
        %558 = vmatpush1.bf16.msra.mxu0 0
        %559 = vmatprep.mubr.bf16.mxu0 0
        %560 = vmatmul.mubr.bf16.gmra.mrb[0].mxu0 %v409
        %v561 = vpop.f32.mrb[0].mxu0
        %v562 = vadd.f32 %v442, %v561
        %v563 = vpop.f32.mrb[0].mxu0
        %v564 = vadd.f32 %v446, %v563
        %v565 = vpop.f32.mrb[0].mxu0
        %v566 = vpop.f32.mrb[0].mxu0
        %567 = vdwg.mxu0
        %v568 = vmul.f32 %v562, %v562
        %v569 = vmul.f32 %v564, %v564
        %v570 = vmul.f32 %v562, %v568
        %v571 = vmul.f32 %v564, %v569
        %v572 = vmul.f32 %v570, 0.044715
        %v573 = vmul.f32 %v571, 0.044715
        %v574 = vadd.f32 %v562, %v572
        %v575 = vadd.f32 %v564, %v573
        %v576 = vmul.f32 %v574, 0.7978846
        %v577 = vmul.f32 %v575, 0.7978846
        %v578 = vtanh.pop %v576
        %v579 = vtanh.pop %v577
        %v580 = vadd.f32 %v578, 1.0
        %v581 = vadd.f32 %v579, 1.0
        %v582 = vmul.f32 %v580, 0.5
        %v583 = vmul.f32 %v581, 0.5
        %v584 = vmul.f32 %v562, %v582
        %v585 = vmul.f32 %v564, %v583
        %v586 = vld [vmem:[#allocation3] sm:$0xff]
        %v587 = vpack.c.bf16 %v584, %v584
        %v588 = vpack.c.bf16 %v585, %v585
        %v589 = vld [vmem:[#allocation9] sm:$0xf]
        %v590 = vld [vmem:[#allocation9 + $0x4] sm:$0xf]
        %v591 = vld [vmem:[#allocation9 + $0x8] sm:$0xf]
        %v592 = vld [vmem:[#allocation9 + $0xc] sm:$0xf]
        %v593 = vld [vmem:[#allocation9 + $0x10] sm:$0xf]
        %v594 = vld [vmem:[#allocation9 + $0x14] sm:$0xf]
        %v595 = vld [vmem:[#allocation9 + $0x18] sm:$0xf]
        %v596 = vld [vmem:[#allocation9 + $0x1c] sm:$0xf]
        %v597 = vld [vmem:[#allocation9 + $0x20] sm:$0xf]
        %v598 = vld [vmem:[#allocation9 + $0x24] sm:$0xf]
        %v599 = vld [vmem:[#allocation9 + $0x28] sm:$0xf]
        %v600 = vld [vmem:[#allocation9 + $0x2c] sm:$0xf]
        %v601 = vld [vmem:[#allocation9 + $0x30] sm:$0xf]
        %v602 = vld [vmem:[#allocation9 + $0x34] sm:$0xf]
        %v603 = vld [vmem:[#allocation9 + $0x38] sm:$0xf]
        %v604 = vld [vmem:[#allocation9 + $0x3c] sm:$0xf]
        %v605 = vld [vmem:[#allocation9 + $0x40] sm:$0xf]
        %v606 = vld [vmem:[#allocation9 + $0x44] sm:$0xf]
        %v607 = vld [vmem:[#allocation9 + $0x48] sm:$0xf]
        %v608 = vld [vmem:[#allocation9 + $0x4c] sm:$0xf]
        %v609 = vld [vmem:[#allocation9 + $0x50] sm:$0xf]
        %v610 = vld [vmem:[#allocation9 + $0x54] sm:$0xf]
        %v611 = vld [vmem:[#allocation9 + $0x58] sm:$0xf]
        %v612 = vld [vmem:[#allocation9 + $0x5c] sm:$0xf]
        %v613 = vld [vmem:[#allocation9 + $0x60] sm:$0xf]
        %v614 = vld [vmem:[#allocation9 + $0x64] sm:$0xf]
        %v615 = vld [vmem:[#allocation9 + $0x68] sm:$0xf]
        %v616 = vld [vmem:[#allocation9 + $0x6c] sm:$0xf]
        %v617 = vld [vmem:[#allocation9 + $0x70] sm:$0xf]
        %v618 = vld [vmem:[#allocation9 + $0x74] sm:$0xf]
        %v619 = vld [vmem:[#allocation9 + $0x78] sm:$0xf]
        %v620 = vld [vmem:[#allocation9 + $0x7c] sm:$0xf]
        %v653 = vunpack.c.l.b16 %v589
        %v654 = vunpack.c.l.b16 %v590
        %v655 = vunpack.c.l.b16 %v591
        %v656 = vunpack.c.l.b16 %v592
        %v657 = vunpack.c.l.b16 %v593
        %v658 = vunpack.c.l.b16 %v594
        %v659 = vunpack.c.l.b16 %v595
        %v660 = vunpack.c.l.b16 %v596
        %v661 = vunpack.c.l.b16 %v597
        %v662 = vunpack.c.l.b16 %v598
        %v663 = vunpack.c.l.b16 %v599
        %v664 = vunpack.c.l.b16 %v600
        %v665 = vunpack.c.l.b16 %v601
        %v666 = vunpack.c.l.b16 %v602
        %v667 = vunpack.c.l.b16 %v603
        %v668 = vunpack.c.l.b16 %v604
        %v669 = vunpack.c.l.b16 %v605
        %v670 = vunpack.c.l.b16 %v606
        %v671 = vunpack.c.l.b16 %v607
        %v672 = vunpack.c.l.b16 %v608
        %v673 = vunpack.c.l.b16 %v609
        %v674 = vunpack.c.l.b16 %v610
        %v675 = vunpack.c.l.b16 %v611
        %v676 = vunpack.c.l.b16 %v612
        %v677 = vunpack.c.l.b16 %v613
        %v678 = vunpack.c.l.b16 %v614
        %v679 = vunpack.c.l.b16 %v615
        %v680 = vunpack.c.l.b16 %v616
        %v681 = vunpack.c.l.b16 %v617
        %v682 = vunpack.c.l.b16 %v618
        %v683 = vunpack.c.l.b16 %v619
        %v684 = vunpack.c.l.b16 %v620
        %v685 = vpack.c.b16 %v654, %v653
        %v686 = vpack.c.b16 %v656, %v655
        %v687 = vpack.c.b16 %v658, %v657
        %v688 = vpack.c.b16 %v660, %v659
        %v689 = vpack.c.b16 %v662, %v661
        %v690 = vpack.c.b16 %v664, %v663
        %v691 = vpack.c.b16 %v666, %v665
        %v692 = vpack.c.b16 %v668, %v667
        %v693 = vpack.c.b16 %v670, %v669
        %v694 = vpack.c.b16 %v672, %v671
        %v695 = vpack.c.b16 %v674, %v673
        %v696 = vpack.c.b16 %v676, %v675
        %v697 = vpack.c.b16 %v678, %v677
        %v698 = vpack.c.b16 %v680, %v679
        %v699 = vpack.c.b16 %v682, %v681
        %v700 = vpack.c.b16 %v684, %v683
        %717 = vmatprep.subr.bf16.mxu0 0
        %718 = vmatpush1.bf16.msra.mxu0 %v685
        %719 = vmatprep.subr.bf16.mxu0 0
        %720 = vmatpush1.bf16.msra.mxu0 %v686
        %721 = vmatprep.subr.bf16.mxu0 0
        %722 = vmatpush1.bf16.msra.mxu0 %v687
        %723 = vmatprep.subr.bf16.mxu0 0
        %724 = vmatpush1.bf16.msra.mxu0 %v688
        %725 = vmatprep.subr.bf16.mxu0 0
        %726 = vmatpush1.bf16.msra.mxu0 %v689
        %727 = vmatprep.subr.bf16.mxu0 0
        %728 = vmatpush1.bf16.msra.mxu0 %v690
        %729 = vmatprep.subr.bf16.mxu0 0
        %730 = vmatpush1.bf16.msra.mxu0 %v691
        %731 = vmatprep.subr.bf16.mxu0 0
        %732 = vmatpush1.bf16.msra.mxu0 %v692
        %733 = vmatprep.subr.bf16.mxu0 0
        %734 = vmatpush1.bf16.msra.mxu0 %v693
        %735 = vmatprep.subr.bf16.mxu0 0
        %736 = vmatpush1.bf16.msra.mxu0 %v694
        %737 = vmatprep.subr.bf16.mxu0 0
        %738 = vmatpush1.bf16.msra.mxu0 %v695
        %739 = vmatprep.subr.bf16.mxu0 0
        %740 = vmatpush1.bf16.msra.mxu0 %v696
        %741 = vmatprep.subr.bf16.mxu0 0
        %742 = vmatpush1.bf16.msra.mxu0 %v697
        %743 = vmatprep.subr.bf16.mxu0 0
        %744 = vmatpush1.bf16.msra.mxu0 %v698
        %745 = vmatprep.subr.bf16.mxu0 0
        %746 = vmatpush1.bf16.msra.mxu0 %v699
        %747 = vmatprep.subr.bf16.mxu0 0
        %748 = vmatpush1.bf16.msra.mxu0 %v700
        %749 = vmatprep.mubr.bf16.mxu0 %v588
        %750 = vmatmul.mubr.bf16.gmra.mrb[0].mxu0 %v587
        %v751 = vpop.f32.mrb[0].mxu0
        %v752 = vadd.f32 0.0, %v751
        %v753 = vpop.f32.mrb[0].mxu0
        %v754 = vpop.f32.mrb[0].mxu0
        %v755 = vpop.f32.mrb[0].mxu0
        %756 = vdwg.mxu0
        %v757 = vadd.f32 %v586, %v752
        %758 = vst [vmem:[#allocation3] sm:$0xff] %v757
        // Predicated region
        $region65: #{pre_norm_feedforward.1} parent=47 // pred_check
          %p759 = pneg %p373
        $region66: #{pre_norm_feedforward.1} parent=47 // pred_check_branch
          %761 = sbr.rel (%p759) target = $region68
        $region67: #{pre_norm_feedforward.1} parent=47 // pred_region
          %v762 = vld [vmem:[#allocation3] sm:$0xff]
          %v763 = vld [vmem:[%s6] sm:$0x1]
          %v764 = vunpack.c.l.bf16 %v763
          %v765 = vlaneseq
          %v766 = vshrl.u32 %v765, 7
          %v767 = vsub.s32 0, %v766
          %v768 = vrot.slane %v764, %v767
          %v769 = vadd.f32 %v762, %v768
          %770 = vst [vmem:[%s364] sm:$0xff] %v769
        $region68: #{pre_norm_feedforward.1} parent=47 // pred_fallthru
          _
        %s771 = sand.u32 %s212, 1
        %s772 = scalar_lea.sflag [#allocation6], %s771
        %s773 = sand.u32 %s212, 1
        %s774 = smul.addr %s773, 8
        %s775 = scalar_lea.vmem [#allocation10], %s774
        // Predicated region
        $region69: #{pre_norm_feedforward.1} parent=47 // pred_check
          %p776 = pneg %p222
        $region70: #{pre_norm_feedforward.1} parent=47 // pred_check_branch
          %778 = sbr.rel (%p776) target = $region72
        $region71: #{pre_norm_feedforward.1} parent=47 // pred_region
          %s780 = ssub.s32 128, 128
          %781 = vsyncadd %s772, %s780
          %s782 = smul.addr %s29, 128
          %s783 = scalar_lea.hbm %s7, %s782
          %s785 = sshll.u32 %s775, 4
          %s786 = int_to_ptr.vmem [resolvable:$true] %s785
          %788 = dma.vmem_to_hbm [thread:$0]  %s786, 128, %s783, %s772
        $region72: #{pre_norm_feedforward.1} parent=47 // pred_fallthru
          _
      $region48: #{pre_norm_feedforward.1} parent=5 // pred_fallthru
        _
      %p789 = scmp.le.s32.totalorder 2, %s20
      // Predicated region
      $region73: #{pre_norm_feedforward.1} parent=5 // pred_check
        %p790 = pneg %p789
      $region74: #{pre_norm_feedforward.1} parent=5 // pred_check_branch
        %792 = sbr.rel (%p790) target = $region76
      $region75: #{pre_norm_feedforward.1} parent=5 // pred_region
        %s793 = ssub.s32 %s20, 2
        // Predicated region
        $region77: #{pre_norm_feedforward.1} parent=75 // pred_check
          %p794 = pneg %p228
        $region78: #{pre_norm_feedforward.1} parent=75 // pred_check_branch
          %796 = sbr.rel (%p794) target = $region80
        $region79: #{pre_norm_feedforward.1} parent=75 // pred_region
          %s797 = sand.u32 %s213, 1
          %s798 = scalar_lea.sflag [#allocation6], %s797
          %s799 = sand.u32 %s213, 1
          %s800 = smul.addr %s799, 8
          %s801 = scalar_lea.vmem [#allocation10], %s800
          %802 = dma.done %s798, 128
        $region80: #{pre_norm_feedforward.1} parent=75 // pred_fallthru
          _
      $region76: #{pre_norm_feedforward.1} parent=5 // pred_fallthru
        _
    $region6: #{pre_norm_feedforward.1} parent=1 // loop_footer
      %s24 = sadd.s32 1, %s20
    $region7: #{pre_norm_feedforward.1} parent=1 // loop_footer_branch
      %19 = sbr.rel target = $region3
    $region8: #{pre_norm_feedforward.1} parent=1 // loop_exit
      _
    %803 = vsyncpa [#allocation5], 1
    %s804 = scalar_lea.sflag [#allocation5], 1
    %805 = vsyncpa %s804, 1
    %806 = vsyncpa [#allocation8], 1
    %807 = vsyncpa [#allocation6], 1
    %s808 = scalar_lea.sflag [#allocation6], 1
    %809 = vsyncpa %s808, 1

</llo_original>
